<compile_context>
chip_gen: v5e
topology: v5e:2x2
jax: 0.10.0
libtpu: 0.0.40
codegen_flags: <defaults>
</compile_context>

<pallas_src>
import jax
import jax.numpy as jnp
from jax.experimental import pallas as pl
from jax.experimental.pallas import tpu as pltpu

# ----------------------------- model dims -----------------------------------
X_DIM = 2
Y_DIM = 2
D_IN = X_DIM + Y_DIM          # 4
D_PAD = 8                     # context features zero-padded to 8 inside kernel
HIDDEN = 32
R_DIM = 32                    # deterministic representation size
Z_DIM = 32                    # latent size
FUSED = 2 * HIDDEN            # 64: deterministic | latent streams side by side
SLAB_W = 4 * Z_DIM            # 128-lane output slab: [r | mu | sigma | pre]

# packed-weight row offsets (all multiples of 8 so static slices are aligned)
_W1_OFF = 0                   # (8,  64)  rows D_IN..8 are zero padding
_W2_OFF = _W1_OFF + D_PAD     # (64, 64)  block-diag wd2 ⊕ wl2
_W3_OFF = _W2_OFF + FUSED     # (64, 64)  block-diag wd3 ⊕ wl3
_WH_OFF = _W3_OFF + FUSED     # (32, 64)  [wmu | wsig]
_B_OFF = _WH_OFF + HIDDEN     # rows _B_OFF.._B_OFF+3: b1, b2, b3, bh; +4..+7 zeros
_W_ROWS = _B_OFF + 8          # 176 total rows


# ------------------------------ kernel --------------------------------------
def encoder_kernel(ctx_ref, w_ref, out_ref):
    f32 = jnp.float32
    m = ctx_ref.shape[0]                  # TB * N_ctx   (static)
    tb = out_ref.shape[0]                 # TB           (static)
    n_ctx = m // tb

    # pad context features 4 -> 8 lanes in-kernel (cheap VPU concat; the
    # matching w1 rows D_IN..8 are zero so the extra lanes contribute nothing)
    h4 = ctx_ref[...].astype(f32)                                    # (M, 4)
    h = jnp.concatenate([h4, jnp.zeros_like(h4)], axis=-1)           # (M, 8)

    # static, 8-row-aligned slices of the single packed weight input
    w1 = w_ref[_W1_OFF:_W1_OFF + D_PAD, :]                           # (8, 64)
    w2 = w_ref[_W2_OFF:_W2_OFF + FUSED, :]                           # (64, 64)
    w3 = w_ref[_W3_OFF:_W3_OFF + FUSED, :]                           # (64, 64)
    wh = w_ref[_WH_OFF:_WH_OFF + HIDDEN, :]                          # (32, 64)
    b1 = w_ref[_B_OFF + 0:_B_OFF + 1, :]                             # (1, 64)
    b2 = w_ref[_B_OFF + 1:_B_OFF + 2, :]
    b3 = w_ref[_B_OFF + 2:_B_OFF + 3, :]
    bh = w_ref[_B_OFF + 3:_B_OFF + 4, :]

    # fused per-point MLP: both encoder streams in one 64-lane matmul pair
    a = jnp.maximum(jnp.dot(h, w1, preferred_element_type=f32) + b1, 0.0)   # (M, 64)
    a = jnp.maximum(jnp.dot(a, w2, preferred_element_type=f32) + b2, 0.0)   # (M, 64)

    # mean over context points: reshape + sublane reduce (no O(TB^2) pool
    # matrix; cleanest when n_ctx % 8 == 0, but correct for any n_ctx)
    pooled = jnp.sum(a.reshape(tb, n_ctx, FUSED), axis=1) * (1.0 / n_ctx)   # (TB, 64)

    # third layer of both streams as one block-diagonal matmul
    # (deterministic layer 3 is affine, so mean(layer3(x)) == layer3(mean(x)))
    a3 = jnp.dot(pooled, w3, preferred_element_type=f32) + b3               # (TB, 64)
    r = a3[:, :R_DIM]                                    # deterministic repr (no relu)
    s = jnp.maximum(a3[:, R_DIM:], 0.0)                  # latent hidden (relu)

    # fused mu/sigma heads
    head = jnp.dot(s, wh, preferred_element_type=f32) + bh                  # (TB, 64)
    mu = head[:, :Z_DIM]
    pre = head[:, Z_DIM:]
    sigma = 0.1 + 0.9 * jax.nn.sigmoid(pre)

    # single lane-dense 128-wide output row per batch element: [r|mu|sigma|pre]
    # (`pre` is lane filler to keep the store an unmasked full-vreg vst)
    out_ref[...] = jnp.concatenate([r, mu, sigma, pre], axis=-1).astype(out_ref.dtype)


# ------------------------------ params ---------------------------------------
PARAM_ORDER = ["wd1", "bd1", "wd2", "bd2", "wd3", "bd3",
               "wl1", "bl1", "wl2", "bl2", "wl3", "bl3",
               "wmu", "bmu", "wsig", "bsig"]


def init_params(key):
    shapes = [(D_IN, HIDDEN), (1, HIDDEN),
              (HIDDEN, HIDDEN), (1, HIDDEN),
              (HIDDEN, R_DIM), (1, R_DIM),
              (D_IN, HIDDEN), (1, HIDDEN),
              (HIDDEN, HIDDEN), (1, HIDDEN),
              (HIDDEN, HIDDEN), (1, HIDDEN),
              (HIDDEN, Z_DIM), (1, Z_DIM),
              (HIDDEN, Z_DIM), (1, Z_DIM)]
    keys = jax.random.split(key, len(shapes))
    return {n: (0.1 * jax.random.normal(k, s, dtype=jnp.float32))
            for n, s, k in zip(PARAM_ORDER, shapes, keys)}


def pack_params(p):
    """Pack the 16 parameter tensors into a single (176, 64) array."""
    H = HIDDEN
    w1 = jnp.zeros((D_PAD, FUSED), jnp.float32)
    w1 = w1.at[:D_IN, :H].set(p["wd1"]).at[:D_IN, H:].set(p["wl1"])
    w2 = jnp.zeros((FUSED, FUSED), jnp.float32)
    w2 = w2.at[:H, :H].set(p["wd2"]).at[H:, H:].set(p["wl2"])
    w3 = jnp.zeros((FUSED, FUSED), jnp.float32)
    w3 = w3.at[:H, :H].set(p["wd3"]).at[H:, H:].set(p["wl3"])
    wh = jnp.concatenate([p["wmu"], p["wsig"]], axis=-1)       # (32, 64)
    biases = jnp.concatenate([
        jnp.concatenate([p["bd1"], p["bl1"]], axis=-1),
        jnp.concatenate([p["bd2"], p["bl2"]], axis=-1),
        jnp.concatenate([p["bd3"], p["bl3"]], axis=-1),
        jnp.concatenate([p["bmu"], p["bsig"]], axis=-1),
        jnp.zeros((4, FUSED), jnp.float32),
    ], axis=0)                                                 # (8, 64)
    return jnp.concatenate([w1, w2, w3, wh, biases], axis=0)   # (176, 64)


# ------------------------------ wrapper --------------------------------------
@jax.jit
def encoder_forward(x_context, y_context, x_target, eps, params):
    """Returns (output, (mu, sigma, z)) like the PyTorch Encoder.forward.
    eps is the standard-normal reparameterization noise, shape (B, Z_DIM)."""
    B, N_ctx, _ = x_context.shape
    N_tgt = x_target.shape[1]

    # --- batch tile selection ------------------------------------------------
    # Target ~4096 per-point matmul rows per grid step (per-step fixed cost is
    # ~0.35 us, so tiles must be large); for B >= 16 keep at least 2 grid
    # steps so the "parallel" batch axis shards across v7x's two TensorCores.
    B8 = ((B + 7) // 8) * 8
    tb_cap = max(8, min(1024, ((4096 // max(N_ctx, 1)) // 8) * 8))
    if B8 <= 8:
        TB = B8
    else:
        TB = min(tb_cap, max(8, ((B8 // 2) // 8) * 8))
    B_pad = pl.cdiv(B8, TB) * TB
    n_steps = B_pad // TB
    M = TB * N_ctx

    # glue: concat context features (no host-side 4->8 pad), pad batch, flatten
    ctx = jnp.concatenate([x_context, y_context], axis=-1)          # (B, N_ctx, 4)
    ctx = jnp.pad(ctx, ((0, B_pad - B), (0, 0), (0, 0)))
    ctx_flat = ctx.reshape(B_pad * N_ctx, D_IN)                     # (B_pad*N_ctx, 4)

    w_packed = pack_params(params)                                  # (176, 64)

    cost = pl.CostEstimate(
        flops=2 * B_pad * (N_ctx * D_PAD * FUSED + N_ctx * FUSED * FUSED
                           + FUSED * FUSED + HIDDEN * FUSED),
        transcendentals=B_pad * Z_DIM,
        bytes_accessed=4 * (ctx_flat.size + n_steps * w_packed.size
                            + B_pad * SLAB_W),
    )

    slab = pl.pallas_call(
        encoder_kernel,
        grid=(n_steps,),
        in_specs=[
            pl.BlockSpec((M, D_IN), lambda b: (b, 0)),              # context points
            pl.BlockSpec((_W_ROWS, FUSED), lambda b: (0, 0)),       # packed weights
        ],
        out_specs=pl.BlockSpec((TB, SLAB_W), lambda b: (b, 0)),     # [r|mu|sigma|pre]
        out_shape=jax.ShapeDtypeStruct((B_pad, SLAB_W), jnp.float32),
        compiler_params=pltpu.CompilerParams(
            dimension_semantics=("parallel",),
            vmem_limit_bytes=32 * 1024 * 1024,
        ),
        cost_estimate=cost,
    )(ctx_flat, w_packed)

    # cheap elementwise epilogue (fused by XLA / downstream decoder)
    r = slab[:B, 0:R_DIM]
    mu = slab[:B, R_DIM:R_DIM + Z_DIM]
    sigma = slab[:B, R_DIM + Z_DIM:R_DIM + 2 * Z_DIM]
    z = mu + sigma * eps
    rz = jnp.concatenate([r, z], axis=-1)                           # (B, 64)
    out = jnp.broadcast_to(rz[:, None, :], (B, N_tgt, R_DIM + Z_DIM))
    return out, (mu, sigma, z)


# ------------------------- pure-JAX reference --------------------------------
def encoder_reference(x_context, y_context, x_target, eps, p):
    h = jnp.concatenate([x_context, y_context], axis=-1)
    d = jax.nn.relu(h @ p["wd1"] + p["bd1"])
    d = jax.nn.relu(d @ p["wd2"] + p["bd2"])
    d = d @ p["wd3"] + p["bd3"]
    r = jnp.mean(d, axis=1, keepdims=True)                          # (B,1,R)
    l = jax.nn.relu(h @ p["wl1"] + p["bl1"])
    l = jax.nn.relu(l @ p["wl2"] + p["bl2"])
    s = jnp.mean(l, axis=1, keepdims=True)
    s = jax.nn.relu(s @ p["wl3"] + p["bl3"])
    mu = s @ p["wmu"] + p["bmu"]
    sigma = 0.1 + 0.9 * jax.nn.sigmoid(s @ p["wsig"] + p["bsig"])
    z = mu + sigma * eps[:, None, :]
    B, n_tgt = h.shape[0], x_target.shape[1]
    r_rep = jnp.broadcast_to(r, (B, n_tgt, R_DIM))
    z_rep = jnp.broadcast_to(z, (B, n_tgt, Z_DIM))
    return jnp.concatenate([r_rep, z_rep], axis=-1), (mu[:, 0], sigma[:, 0], z[:, 0])


# ----------------------------------- main -------------------------------------
if __name__ == "__main__":
    key = jax.random.PRNGKey(0)
    k_params, k_small, k_big = jax.random.split(key, 3)
    params = init_params(k_params)

    def run_check(B, n_ctx, n_tgt, k):
        kxc, kyc, kxt, keps = jax.random.split(k, 4)
        xc = jax.random.normal(kxc, (B, n_ctx, X_DIM), dtype=jnp.float32)
        yc = jax.random.normal(kyc, (B, n_ctx, Y_DIM), dtype=jnp.float32)
        xt = jax.random.normal(kxt, (B, n_tgt, X_DIM), dtype=jnp.float32)
        eps = jax.random.normal(keps, (B, Z_DIM), dtype=jnp.float32)

        out, (mu, sigma, z) = encoder_forward(xc, yc, xt, eps, params)
        jax.block_until_ready((out, mu, sigma, z))

        ref_out, (rmu, rsig, rz) = encoder_reference(xc, yc, xt, eps, params)
        assert out.shape == (B, n_tgt, R_DIM + Z_DIM)
        assert jnp.allclose(out, ref_out, atol=1e-3), "main output mismatch"
        assert jnp.allclose(mu, rmu, atol=1e-3), "mu mismatch"
        assert jnp.allclose(sigma, rsig, atol=1e-3), "sigma mismatch"
        assert jnp.allclose(z, rz, atol=1e-3), "z mismatch"

    # small demo shapes (single grid step, full-dim blocks, B padded 2 -> 8)
    run_check(B=2, n_ctx=8, n_tgt=8, k=k_small)
    # tiled + padded path (TB=16, B padded 40 -> 48, grid of 3 parallel steps)
    run_check(B=40, n_ctx=8, n_tgt=8, k=k_big)

    # TODO(synk): reparameterization noise is passed in as `eps` rather than
    # sampled with the on-chip PRNG, matching the reference-comparable setup.
    print("KERNEL_OK")
</pallas_src>

<mosaic_0001>
module attributes {stable_mosaic.version = 11 : i64} {
  func.func @encoder_kernel(%arg0: i32, %arg1: memref<64x4xf32, #tpu.memory_space<vmem>>, %arg2: memref<176x64xf32, #tpu.memory_space<vmem>>, %arg3: memref<8x128xf32, #tpu.memory_space<vmem>>) attributes {dimension_semantics = [#tpu.dimension_semantics<parallel>], iteration_bounds = array<i64: 1>, scalar_prefetch = 0 : i64, scratch_operands = 0 : i64, tpu.core_type = #tpu.core_type<tc>, window_params = [{transform_indices = @transform_0, window_bounds = array<i64: 64, 4>}, {pipeline_mode = #tpu.pipeline_mode<synchronous>, transform_indices = @transform_1, window_bounds = array<i64: 176, 64>}, {transform_indices = @transform_2, window_bounds = array<i64: 8, 128>}]} {
    %c0 = arith.constant 0 : index
    %c0_0 = arith.constant 0 : index
    %0 = vector.load %arg1[%c0, %c0_0] : memref<64x4xf32, #tpu.memory_space<vmem>>, vector<64x4xf32>
    %cst = arith.constant 0.000000e+00 : f32
    %1 = vector.broadcast %cst : f32 to vector<64x4xf32>
    %2 = tpu.concatenate %0, %1 in 1 : vector<64x4xf32>, vector<64x4xf32> -> vector<64x8xf32>
    %c0_1 = arith.constant 0 : index
    %c0_2 = arith.constant 0 : index
    %3 = vector.load %arg2[%c0_1, %c0_2] : memref<176x64xf32, #tpu.memory_space<vmem>>, vector<8x64xf32>
    %c8 = arith.constant 8 : index
    %c0_3 = arith.constant 0 : index
    %4 = vector.load %arg2[%c8, %c0_3] : memref<176x64xf32, #tpu.memory_space<vmem>>, vector<64x64xf32>
    %c72 = arith.constant 72 : index
    %c0_4 = arith.constant 0 : index
    %5 = vector.load %arg2[%c72, %c0_4] : memref<176x64xf32, #tpu.memory_space<vmem>>, vector<64x64xf32>
    %c136 = arith.constant 136 : index
    %c0_5 = arith.constant 0 : index
    %6 = vector.load %arg2[%c136, %c0_5] : memref<176x64xf32, #tpu.memory_space<vmem>>, vector<32x64xf32>
    %c168 = arith.constant 168 : index
    %c0_6 = arith.constant 0 : index
    %7 = vector.load %arg2[%c168, %c0_6] : memref<176x64xf32, #tpu.memory_space<vmem>>, vector<1x64xf32>
    %c169 = arith.constant 169 : index
    %c0_7 = arith.constant 0 : index
    %8 = vector.load %arg2[%c169, %c0_7] : memref<176x64xf32, #tpu.memory_space<vmem>>, vector<1x64xf32>
    %c170 = arith.constant 170 : index
    %c0_8 = arith.constant 0 : index
    %9 = vector.load %arg2[%c170, %c0_8] : memref<176x64xf32, #tpu.memory_space<vmem>>, vector<1x64xf32>
    %c171 = arith.constant 171 : index
    %c0_9 = arith.constant 0 : index
    %10 = vector.load %arg2[%c171, %c0_9] : memref<176x64xf32, #tpu.memory_space<vmem>>, vector<1x64xf32>
    %cst_10 = arith.constant dense<0.000000e+00> : vector<64x64xf32>
    %11 = tpu.matmul %2, %3, %cst_10 {dimension_numbers = #tpu.dot_dimension_numbers<[1], [0], [0], [1], [0, 0, 1, 1], [], []>} : vector<64x8xf32>, vector<8x64xf32>, vector<64x64xf32> -> vector<64x64xf32>
    %12 = vector.broadcast %7 : vector<1x64xf32> to vector<64x64xf32>
    %13 = arith.addf %11, %12 : vector<64x64xf32>
    %cst_11 = arith.constant 0.000000e+00 : f32
    %14 = vector.broadcast %cst_11 : f32 to vector<64x64xf32>
    %15 = arith.maximumf %13, %14 : vector<64x64xf32>
    %cst_12 = arith.constant dense<0.000000e+00> : vector<64x64xf32>
    %16 = tpu.matmul %15, %4, %cst_12 {dimension_numbers = #tpu.dot_dimension_numbers<[1], [0], [0], [1], [0, 0, 1, 1], [], []>} : vector<64x64xf32>, vector<64x64xf32>, vector<64x64xf32> -> vector<64x64xf32>
    %17 = vector.broadcast %8 : vector<1x64xf32> to vector<64x64xf32>
    %18 = arith.addf %16, %17 : vector<64x64xf32>
    %cst_13 = arith.constant 0.000000e+00 : f32
    %19 = vector.broadcast %cst_13 : f32 to vector<64x64xf32>
    %20 = arith.maximumf %18, %19 : vector<64x64xf32>
    %21 = vector.shape_cast %20 : vector<64x64xf32> to vector<8x8x64xf32>
    %cst_14 = arith.constant dense<0.000000e+00> : vector<8x64xf32>
    %22 = vector.multi_reduction <add>, %21, %cst_14 [1] : vector<8x8x64xf32> to vector<8x64xf32>
    %cst_15 = arith.constant 1.250000e-01 : f32
    %23 = vector.broadcast %cst_15 : f32 to vector<8x64xf32>
    %24 = arith.mulf %22, %23 : vector<8x64xf32>
    %cst_16 = arith.constant dense<0.000000e+00> : vector<8x64xf32>
    %25 = tpu.matmul %24, %5, %cst_16 {dimension_numbers = #tpu.dot_dimension_numbers<[1], [0], [0], [1], [0, 0, 1, 1], [], []>} : vector<8x64xf32>, vector<64x64xf32>, vector<8x64xf32> -> vector<8x64xf32>
    %26 = vector.broadcast %9 : vector<1x64xf32> to vector<8x64xf32>
    %27 = arith.addf %25, %26 : vector<8x64xf32>
    %28 = vector.extract_strided_slice %27 {offsets = [0, 0], sizes = [8, 32], strides = [1, 1]} : vector<8x64xf32> to vector<8x32xf32>
    %29 = vector.extract_strided_slice %27 {offsets = [0, 32], sizes = [8, 32], strides = [1, 1]} : vector<8x64xf32> to vector<8x32xf32>
    %cst_17 = arith.constant 0.000000e+00 : f32
    %30 = vector.broadcast %cst_17 : f32 to vector<8x32xf32>
    %31 = arith.maximumf %29, %30 : vector<8x32xf32>
    %cst_18 = arith.constant dense<0.000000e+00> : vector<8x64xf32>
    %32 = tpu.matmul %31, %6, %cst_18 {dimension_numbers = #tpu.dot_dimension_numbers<[1], [0], [0], [1], [0, 0, 1, 1], [], []>} : vector<8x32xf32>, vector<32x64xf32>, vector<8x64xf32> -> vector<8x64xf32>
    %33 = vector.broadcast %10 : vector<1x64xf32> to vector<8x64xf32>
    %34 = arith.addf %32, %33 : vector<8x64xf32>
    %35 = vector.extract_strided_slice %34 {offsets = [0, 0], sizes = [8, 32], strides = [1, 1]} : vector<8x64xf32> to vector<8x32xf32>
    %36 = vector.extract_strided_slice %34 {offsets = [0, 32], sizes = [8, 32], strides = [1, 1]} : vector<8x64xf32> to vector<8x32xf32>
    %37 = arith.negf %36 : vector<8x32xf32>
    %38 = math.exp %37 : vector<8x32xf32>
    %cst_19 = arith.constant 1.000000e+00 : f32
    %39 = vector.broadcast %cst_19 : f32 to vector<8x32xf32>
    %40 = arith.addf %39, %38 : vector<8x32xf32>
    %41 = arith.divf %39, %40 : vector<8x32xf32>
    %cst_20 = arith.constant 0.899999976 : f32
    %42 = vector.broadcast %cst_20 : f32 to vector<8x32xf32>
    %43 = arith.mulf %42, %41 : vector<8x32xf32>
    %cst_21 = arith.constant 1.000000e-01 : f32
    %44 = vector.broadcast %cst_21 : f32 to vector<8x32xf32>
    %45 = arith.addf %44, %43 : vector<8x32xf32>
    %46 = tpu.concatenate %28, %35, %45, %36 in 1 : vector<8x32xf32>, vector<8x32xf32>, vector<8x32xf32>, vector<8x32xf32> -> vector<8x128xf32>
    %c0_22 = arith.constant 0 : index
    %c0_23 = arith.constant 0 : index
    %47 = vector.load %arg3[%c0_22, %c0_23] : memref<8x128xf32, #tpu.memory_space<vmem>>, vector<8x128xf32>
    tpu.vector_store %arg3[%c0_22, %c0_23], %46 {strides = array<i32>} : memref<8x128xf32, #tpu.memory_space<vmem>>, vector<8x128xf32>,
    return
  }
  func.func @transform_0(%arg0: i32) -> (i32, i32) {
    %c0_i32 = arith.constant 0 : i32
    %c0_i32_0 = arith.constant 0 : i32
    return %arg0, %c0_i32 : i32, i32
  }
  func.func @transform_1(%arg0: i32) -> (i32, i32) {
    %c0_i32 = arith.constant 0 : i32
    %c0_i32_0 = arith.constant 0 : i32
    %c0_i32_1 = arith.constant 0 : i32
    return %c0_i32, %c0_i32_0 : i32, i32
  }
  func.func @transform_2(%arg0: i32) -> (i32, i32) {
    %c0_i32 = arith.constant 0 : i32
    %c0_i32_0 = arith.constant 0 : i32
    return %arg0, %c0_i32 : i32, i32
  }
}

</mosaic_0001>

<llo_original>
// kernel: encoder_forward.1
$region0: #{encoder_forward.1}
  #allocation0 [shape = 'u32[]', space=smem, size = 0x4, offset = 0x4, fixed_abs, tag = 'smem constant byte address 0x4 - core index']
  #allocation1 [shape = 'u32[72,128]{1,0:T(1,128)}', space=vmem, size = 0x9000, scoped, tag = 'internal scratch']
  %s0 = inlined_call_operand.vmem [shape: f32[64,4], index: 0, kind: input, shape index: {}]
  %s1 = inlined_call_operand.vmem [shape: f32[176,64], index: 1, kind: input, shape index: {}]
  %s2 = inlined_call_operand.vmem [shape: f32[8,128], index: 2, kind: output, shape index: {}]
  %s3 = sld [smem:[#allocation0]]
  $region18: #{encoder_forward.1} parent=0
    _
  %s5 = ssub.s32 1, %s3
  %s6 = scalar_select 0, %s5, %s3
  // Predicated region
  $region2: #{encoder_forward.1} parent=0 // pred_check
    _
  $region3: #{encoder_forward.1} parent=0 // pred_check_branch
    %8 = sbr.rel (0) target = $region5
  $region4: #{encoder_forward.1} parent=0 // pred_region
    _
  $region5: #{encoder_forward.1} parent=0 // pred_fallthru
    _
  // Predicated region
  $region6: #{encoder_forward.1} parent=0 // pred_check
    _
  $region7: #{encoder_forward.1} parent=0 // pred_check_branch
    %10 = sbr.rel (0) target = $region9
  $region8: #{encoder_forward.1} parent=0 // pred_region
    _
  $region9: #{encoder_forward.1} parent=0 // pred_fallthru
    _
  %v11 = vld [vmem:[%s0] sm:$0xff]
  %v12 = vld [vmem:[%s0 + $0x8] sm:$0xff]
  %v13 = vld [vmem:[%s0 + $0x10] sm:$0xff]
  %v14 = vld [vmem:[%s0 + $0x18] sm:$0xff]
  %v15 = vld [vmem:[%s0 + $0x20] sm:$0xff]
  %v16 = vld [vmem:[%s0 + $0x28] sm:$0xff]
  %v17 = vld [vmem:[%s0 + $0x30] sm:$0xff]
  %v18 = vld [vmem:[%s0 + $0x38] sm:$0xff]
  %vm19 = vcmask 31744
  %v20 = vsel %vm19, %v11, 0.0
  %v21 = vsel %vm19, %v12, 0.0
  %v22 = vsel %vm19, %v13, 0.0
  %v23 = vsel %vm19, %v14, 0.0
  %v24 = vsel %vm19, %v15, 0.0
  %v25 = vsel %vm19, %v16, 0.0
  %v26 = vsel %vm19, %v17, 0.0
  %v27 = vsel %vm19, %v18, 0.0
  %v28 = vld [vmem:[%s1] sm:$0xff]
  %v29 = vld [vmem:[%s1 + $0x8] sm:$0xff]
  %v30 = vld [vmem:[%s1 + $0x10] sm:$0xff]
  %v31 = vld [vmem:[%s1 + $0x18] sm:$0xff]
  %v32 = vld [vmem:[%s1 + $0x20] sm:$0xff]
  %v33 = vld [vmem:[%s1 + $0x28] sm:$0xff]
  %v34 = vld [vmem:[%s1 + $0x30] sm:$0xff]
  %v35 = vld [vmem:[%s1 + $0x38] sm:$0xff]
  %v36 = vld [vmem:[%s1 + $0x40] sm:$0xff]
  %v37 = vld [vmem:[%s1 + $0x48] sm:$0xff]
  %v38 = vld [vmem:[%s1 + $0x50] sm:$0xff]
  %v39 = vld [vmem:[%s1 + $0x58] sm:$0xff]
  %v40 = vld [vmem:[%s1 + $0x60] sm:$0xff]
  %v41 = vld [vmem:[%s1 + $0x68] sm:$0xff]
  %v42 = vld [vmem:[%s1 + $0x70] sm:$0xff]
  %v43 = vld [vmem:[%s1 + $0x78] sm:$0xff]
  %v44 = vld [vmem:[%s1 + $0x80] sm:$0xff]
  %v45 = vld [vmem:[%s1 + $0x88] sm:$0xff]
  %v46 = vld [vmem:[%s1 + $0x90] sm:$0xff]
  %v47 = vld [vmem:[%s1 + $0x98] sm:$0xff]
  %v48 = vld [vmem:[%s1 + $0xa0] sm:$0xff]
  %v49 = vld [vmem:[%s1 + $0xa8] sm:$0x1]
  %v50 = vld [vmem:[%s1 + $0xa9] sm:$0x1]
  %v51 = vld [vmem:[%s1 + $0xaa] sm:$0x1]
  %v52 = vld [vmem:[%s1 + $0xab] sm:$0x1]
  %v53 = vperm.slane %v49, 0
  %vm54 = vcmask 64512
  %v56 = vsel %vm54, %v20, 0
  %v59 = vsel %vm54, %v21, 0
  %v62 = vsel %vm54, %v22, 0
  %v65 = vsel %vm54, %v23, 0
  %v68 = vsel %vm54, %v24, 0
  %v71 = vsel %vm54, %v25, 0
  %v74 = vsel %vm54, %v26, 0
  %v77 = vsel %vm54, %v27, 0
  %79 = vmatpush.msra.mxu0 0.0
  %80 = vmatpush.msra.mxu0 0.0
  %81 = vmatpush.msra.mxu0 0.0
  %82 = vmatpush.msra.mxu0 0.0
  %83 = vmatpush.msra.mxu0 0.0
  %84 = vmatpush.msra.mxu0 0.0
  %85 = vmatpush.msra.mxu0 0.0
  %86 = vmatpush.msra.mxu0 0.0
  %87 = vmatpush.msra.mxu0 0.0
  %88 = vmatpush.msra.mxu0 0.0
  %89 = vmatpush.msra.mxu0 0.0
  %90 = vmatpush.msra.mxu0 0.0
  %91 = vmatpush.msra.mxu0 0.0
  %92 = vmatpush.msra.mxu0 0.0
  %93 = vmatpush.msra.mxu0 0.0
  %94 = vmatpush.msra.mxu0 %v28
  %95 = vmatmul.f32.gmra.mxu0 %v56
  %v96 = vpop.f32.mrf.mxu0
  %v97 = vadd.f32 %v53, %v96
  %98 = vmatmul.f32.gmra.mxu0 %v59
  %v99 = vpop.f32.mrf.mxu0
  %v100 = vadd.f32 %v53, %v99
  %101 = vmatmul.f32.gmra.mxu0 %v62
  %v102 = vpop.f32.mrf.mxu0
  %v103 = vadd.f32 %v53, %v102
  %104 = vmatmul.f32.gmra.mxu0 %v65
  %v105 = vpop.f32.mrf.mxu0
  %v106 = vadd.f32 %v53, %v105
  %107 = vmatmul.f32.gmra.mxu0 %v68
  %v108 = vpop.f32.mrf.mxu0
  %v109 = vadd.f32 %v53, %v108
  %110 = vmatmul.f32.gmra.mxu0 %v71
  %v111 = vpop.f32.mrf.mxu0
  %v112 = vadd.f32 %v53, %v111
  %113 = vmatmul.f32.gmra.mxu0 %v74
  %v114 = vpop.f32.mrf.mxu0
  %v115 = vadd.f32 %v53, %v114
  %116 = vmatmul.f32.gmra.mxu0 %v77
  %v117 = vpop.f32.mrf.mxu0
  %v118 = vadd.f32 %v53, %v117
  %119 = vdwg.mxu0
  %v120 = vmax.f32 %v97, 0.0
  %v121 = vmax.f32 %v100, 0.0
  %v122 = vmax.f32 %v103, 0.0
  %v123 = vmax.f32 %v106, 0.0
  %v124 = vmax.f32 %v109, 0.0
  %v125 = vmax.f32 %v112, 0.0
  %v126 = vmax.f32 %v115, 0.0
  %v127 = vmax.f32 %v118, 0.0
  %v128 = vperm.slane %v50, 0
  %vm129 = vcmask 523264
  %v131 = vsel %vm129, %v120, 0
  %v134 = vsel %vm129, %v121, 0
  %v137 = vsel %vm129, %v122, 0
  %v140 = vsel %vm129, %v123, 0
  %v143 = vsel %vm129, %v124, 0
  %v146 = vsel %vm129, %v125, 0
  %v149 = vsel %vm129, %v126, 0
  %v152 = vsel %vm129, %v127, 0
  %154 = vmatpush.msra.mxu0 0.0
  %155 = vmatpush.msra.mxu0 0.0
  %156 = vmatpush.msra.mxu0 0.0
  %157 = vmatpush.msra.mxu0 0.0
  %158 = vmatpush.msra.mxu0 0.0
  %159 = vmatpush.msra.mxu0 0.0
  %160 = vmatpush.msra.mxu0 0.0
  %161 = vmatpush.msra.mxu0 0.0
  %162 = vmatpush.msra.mxu0 %v36
  %163 = vmatpush.msra.mxu0 %v35
  %164 = vmatpush.msra.mxu0 %v34
  %165 = vmatpush.msra.mxu0 %v33
  %166 = vmatpush.msra.mxu0 %v32
  %167 = vmatpush.msra.mxu0 %v31
  %168 = vmatpush.msra.mxu0 %v30
  %169 = vmatpush.msra.mxu0 %v29
  %170 = vmatmul.f32.gmra.mxu0 %v131
  %v171 = vpop.f32.mrf.mxu0
  %v172 = vadd.f32 %v128, %v171
  %173 = vmatmul.f32.gmra.mxu0 %v134
  %v174 = vpop.f32.mrf.mxu0
  %v175 = vadd.f32 %v128, %v174
  %176 = vmatmul.f32.gmra.mxu0 %v137
  %v177 = vpop.f32.mrf.mxu0
  %v178 = vadd.f32 %v128, %v177
  %179 = vmatmul.f32.gmra.mxu0 %v140
  %v180 = vpop.f32.mrf.mxu0
  %v181 = vadd.f32 %v128, %v180
  %182 = vmatmul.f32.gmra.mxu0 %v143
  %v183 = vpop.f32.mrf.mxu0
  %v184 = vadd.f32 %v128, %v183
  %185 = vmatmul.f32.gmra.mxu0 %v146
  %v186 = vpop.f32.mrf.mxu0
  %v187 = vadd.f32 %v128, %v186
  %188 = vmatmul.f32.gmra.mxu0 %v149
  %v189 = vpop.f32.mrf.mxu0
  %v190 = vadd.f32 %v128, %v189
  %191 = vmatmul.f32.gmra.mxu0 %v152
  %v192 = vpop.f32.mrf.mxu0
  %v193 = vadd.f32 %v128, %v192
  %194 = vdwg.mxu0
  %v195 = vmax.f32 %v172, 0.0
  %v196 = vmax.f32 %v175, 0.0
  %v197 = vmax.f32 %v178, 0.0
  %v198 = vmax.f32 %v181, 0.0
  %v199 = vmax.f32 %v184, 0.0
  %v200 = vmax.f32 %v187, 0.0
  %v201 = vmax.f32 %v190, 0.0
  %v202 = vmax.f32 %v193, 0.0
  %v203 = vsel %vm129, %v195, 0.0
  %v204 = vrot.slane %v203, 4
  %v205 = vadd.f32 %v203, %v204
  %v206 = vrot.slane %v205, 2
  %v207 = vadd.f32 %v205, %v206
  %v208 = vrot.slane %v207, 1
  %v209 = vadd.f32 %v207, %v208
  %v210 = vsel %vm129, %v196, 0.0
  %v211 = vrot.slane %v210, 4
  %v212 = vadd.f32 %v210, %v211
  %v213 = vrot.slane %v212, 2
  %v214 = vadd.f32 %v212, %v213
  %v215 = vrot.slane %v214, 1
  %v216 = vadd.f32 %v214, %v215
  %v217 = vsel %vm129, %v197, 0.0
  %v218 = vrot.slane %v217, 4
  %v219 = vadd.f32 %v217, %v218
  %v220 = vrot.slane %v219, 2
  %v221 = vadd.f32 %v219, %v220
  %v222 = vrot.slane %v221, 1
  %v223 = vadd.f32 %v221, %v222
  %v224 = vsel %vm129, %v198, 0.0
  %v225 = vrot.slane %v224, 4
  %v226 = vadd.f32 %v224, %v225
  %v227 = vrot.slane %v226, 2
  %v228 = vadd.f32 %v226, %v227
  %v229 = vrot.slane %v228, 1
  %v230 = vadd.f32 %v228, %v229
  %v231 = vsel %vm129, %v199, 0.0
  %v232 = vrot.slane %v231, 4
  %v233 = vadd.f32 %v231, %v232
  %v234 = vrot.slane %v233, 2
  %v235 = vadd.f32 %v233, %v234
  %v236 = vrot.slane %v235, 1
  %v237 = vadd.f32 %v235, %v236
  %v238 = vsel %vm129, %v200, 0.0
  %v239 = vrot.slane %v238, 4
  %v240 = vadd.f32 %v238, %v239
  %v241 = vrot.slane %v240, 2
  %v242 = vadd.f32 %v240, %v241
  %v243 = vrot.slane %v242, 1
  %v244 = vadd.f32 %v242, %v243
  %v245 = vsel %vm129, %v201, 0.0
  %v246 = vrot.slane %v245, 4
  %v247 = vadd.f32 %v245, %v246
  %v248 = vrot.slane %v247, 2
  %v249 = vadd.f32 %v247, %v248
  %v250 = vrot.slane %v249, 1
  %v251 = vadd.f32 %v249, %v250
  %v252 = vsel %vm129, %v202, 0.0
  %v253 = vrot.slane %v252, 4
  %v254 = vadd.f32 %v252, %v253
  %v255 = vrot.slane %v254, 2
  %v256 = vadd.f32 %v254, %v255
  %v257 = vrot.slane %v256, 1
  %v258 = vadd.f32 %v256, %v257
  %v259 = vmul.f32 %v209, 0.125
  %v260 = vmul.f32 %v216, 0.125
  %v261 = vmul.f32 %v223, 0.125
  %v262 = vmul.f32 %v230, 0.125
  %v263 = vmul.f32 %v237, 0.125
  %v264 = vmul.f32 %v244, 0.125
  %v265 = vmul.f32 %v251, 0.125
  %v266 = vmul.f32 %v258, 0.125
  %v267 = vperm.slane %v51, 0
  %vm276 = vcmask 1041409
  %v277 = vsel %vm276, %v260, %v259
  %vm278 = vcmask 1042434
  %v279 = vsel %vm278, %v261, %v277
  %vm280 = vcmask 1043459
  %v281 = vsel %vm280, %v262, %v279
  %vm282 = vcmask 1044484
  %v283 = vsel %vm282, %v263, %v281
  %vm284 = vcmask 1045509
  %v285 = vsel %vm284, %v264, %v283
  %vm286 = vcmask 1046534
  %v287 = vsel %vm286, %v265, %v285
  %vm288 = vcmask 1047559
  %v289 = vsel %vm288, %v266, %v287
  %v290 = vsel %vm129, %v289, 0
  %292 = vmatpush.msra.mxu0 0.0
  %293 = vmatpush.msra.mxu0 0.0
  %294 = vmatpush.msra.mxu0 0.0
  %295 = vmatpush.msra.mxu0 0.0
  %296 = vmatpush.msra.mxu0 0.0
  %297 = vmatpush.msra.mxu0 0.0
  %298 = vmatpush.msra.mxu0 0.0
  %299 = vmatpush.msra.mxu0 0.0
  %300 = vmatpush.msra.mxu0 %v44
  %301 = vmatpush.msra.mxu0 %v43
  %302 = vmatpush.msra.mxu0 %v42
  %303 = vmatpush.msra.mxu0 %v41
  %304 = vmatpush.msra.mxu0 %v40
  %305 = vmatpush.msra.mxu0 %v39
  %306 = vmatpush.msra.mxu0 %v38
  %307 = vmatpush.msra.mxu0 %v37
  %308 = vmatmul.f32.gmra.mxu0 %v290
  %v309 = vpop.f32.mrf.mxu0
  %v310 = vadd.f32 %v267, %v309
  %311 = vdwg.mxu0
  %v312 = vmax.f32 %v310, 0.0
  %v313 = vperm.slane %v52, 0
  %315 = vrot.lane.b32.xlu0 %v312, 96
  %v316 = vpop.permute.xlu0 %315
  %vm317 = vcmask 261120
  %v318 = vsel %vm317, %v316, 0
  %320 = vmatpush.msra.mxu0 0.0
  %321 = vmatpush.msra.mxu0 0.0
  %322 = vmatpush.msra.mxu0 0.0
  %323 = vmatpush.msra.mxu0 0.0
  %324 = vmatpush.msra.mxu0 0.0
  %325 = vmatpush.msra.mxu0 0.0
  %326 = vmatpush.msra.mxu0 0.0
  %327 = vmatpush.msra.mxu0 0.0
  %328 = vmatpush.msra.mxu0 0.0
  %329 = vmatpush.msra.mxu0 0.0
  %330 = vmatpush.msra.mxu0 0.0
  %331 = vmatpush.msra.mxu0 0.0
  %332 = vmatpush.msra.mxu0 %v48
  %333 = vmatpush.msra.mxu0 %v47
  %334 = vmatpush.msra.mxu0 %v46
  %335 = vmatpush.msra.mxu0 %v45
  %336 = vmatmul.f32.gmra.mxu0 %v318
  %v337 = vpop.f32.mrf.mxu0
  %v338 = vadd.f32 %v313, %v337
  %339 = vdwg.mxu0
  %v340 = vxor.u32 %v338, 2147483648
  %v341 = vmul.f32 %v340, 1.442695
  %v342 = vpow.pop %v341
  %v343 = vadd.f32 %v342, 1.0
  %v344 = vrcp.pop %v343
  %v345 = vmul.f32 %v343, %v344
  %v346 = vsub.f32 1.0, %v345
  %v347 = vmul.f32 %v344, %v346
  %v348 = vadd.f32 %v344, %v347
  %vm349 = vweird.f32 %v343
  %vm350 = vweird.f32 %v344
  %vm351 = vmor %vm349, %vm350
  %v352 = vsel %vm351, %v344, %v348
  %v353 = vand.u32 2147483647, %v343
  %vm354 = vcmp.eq.f32.partialorder %v353, 8.507059e+37
  %v355 = vand.u32 %v343, 2147483648
  %v356 = vor.u32 1.1754944e-38, %v355
  %v357 = vsel %vm354, %v356, %v352
  %v358 = vmul.f32 1.0, %v357
  %v359 = vmul.f32 %v358, 0.9
  %v360 = vadd.f32 %v359, 0.1
  %362 = vrot.lane.b32.xlu0 %v338, 32
  %v363 = vpop.permute.xlu0 %362
  %366 = vrot.lane.b32.xlu0 %v360, 32
  %v367 = vpop.permute.xlu0 %366
  %369 = vrot.lane.b32.xlu0 %v338, 64
  %v370 = vpop.permute.xlu0 %369
  %v372 = vsel %vm317, %v310, %v363
  %v373 = vsel %vm129, %v372, %v367
  %vm374 = vcmask 785408
  %v375 = vsel %vm374, %v373, %v370
  %376 = vst [vmem:[%s2] sm:$0xff] %v375
  // Predicated region
  $region10: #{encoder_forward.1} parent=0 // pred_check
    _
  $region11: #{encoder_forward.1} parent=0 // pred_check_branch
    %378 = sbr.rel (0) target = $region13
  $region12: #{encoder_forward.1} parent=0 // pred_region
    _
  $region13: #{encoder_forward.1} parent=0 // pred_fallthru
    _
  // Predicated region
  $region14: #{encoder_forward.1} parent=0 // pred_check
    _
  $region15: #{encoder_forward.1} parent=0 // pred_check_branch
    %380 = sbr.rel (0) target = $region17
  $region16: #{encoder_forward.1} parent=0 // pred_region
    _
  $region17: #{encoder_forward.1} parent=0 // pred_fallthru
    _

</llo_original>
